<compile_context>
chip_gen: v6e
topology: v6e:2x2x1
jax: 0.10.0
libtpu: 0.0.40
codegen_flags: <defaults>
</compile_context>

<pallas_src>
import functools

import jax
import jax.numpy as jnp
from jax.experimental import pallas as pl
from jax.experimental.pallas import tpu as pltpu


def _head_lse_kernel(x_ref, out_ref, m_sc, s_sc, *, num_classes):
    """One grid step = (head i, batch tile b, class tile k).

    x_ref:   (1, TB, TC) VMEM logits tile, native dtype (bf16 friendly)
    out_ref: (1, TB, 1)  f32 VMEM, log-sum-exp per row; resident across k
    m_sc/s_sc: (TB, 1) f32 scratch: running max / running sum-exp, carried
        across the (innermost, "arbitrary") class-tile axis, re-initialized at
        k == 0 for every (head, batch-tile) pair.
    """
    k = pl.program_id(2)
    x = x_ref[0].astype(jnp.float32)          # (TB, TC), upcast in-register
    TB, TC = x.shape
    last = pl.num_programs(2) - 1

    @pl.when(k == 0)
    def _init():
        m_sc[...] = jnp.full(m_sc.shape, -jnp.inf, jnp.float32)
        s_sc[...] = jnp.zeros(s_sc.shape, jnp.float32)

    def _update(xv):
        # Online log-sum-exp update (flash-softmax style); all per-tile
        # corrections are (TB, 1)-wide, the only full-width work is sub + exp.
        m_prev = m_sc[...]
        m_new = jnp.maximum(m_prev, jnp.max(xv, axis=-1, keepdims=True))
        s_sc[...] = s_sc[...] * jnp.exp(m_prev - m_new) + jnp.sum(
            jnp.exp(xv - m_new), axis=-1, keepdims=True)
        m_sc[...] = m_new

    if num_classes % TC == 0:
        # No ragged tail: no mask anywhere (also covers TC == C exactly).
        _update(x)
    else:
        # Ragged tail: pay the compare+select ONLY on the last class tile.
        @pl.when(k != last)
        def _full_tile():
            _update(x)

        @pl.when(k == last)
        def _tail_tile():
            # Tile-local iota (loop-invariant); shift the scalar bound instead
            # of adding k*TC to every element.  -1e30 sentinel is applied
            # AFTER the f32 upcast, so it never overflows a narrow dtype.
            col = jax.lax.broadcasted_iota(jnp.int32, (TB, TC), 1)
            valid = num_classes - k * TC                # scalar
            _update(jnp.where(col < valid, x, jnp.float32(-1e30)))

    @pl.when(k == last)
    def _finish():
        # lse[b] = max_b + log(sum exp).  Output lane width is 1; total volume
        # is only N*B f32 so the masked store is negligible (a lane-dense
        # (N, B) output would need a (TB,1)->(1,TB) XLU relayout per finish).
        out_ref[0] = m_sc[...] + jnp.log(s_sc[...])


def _vmem_budgets():
    """(per-block byte budget, vmem_limit_bytes) derived from the chip.

    v5e/v6e have 128 MiB physical VMEM -> bigger blocks / fewer grid steps;
    v7x has 64 MiB -> keep headroom for 2x double-buffered input blocks plus
    output and compiler scratch.
    """
    cap = None
    try:
        cap = getattr(pltpu.get_tpu_info(), "vmem_capacity_bytes", None)
    except Exception:  # pragma: no cover - be robust to exotic environments
        cap = None
    if cap is not None and cap >= (96 << 20):
        return 16 << 20, 64 << 20          # v5e / v6e
    return 8 << 20, 32 << 20               # v7x or unknown (conservative)


def _pick_batch_tile(B, max_tile=256):
    """Batch (sublane) tile: full axis when small; otherwise an 8-aligned
    divisor so the batch grid axis can be megacore-parallel and per-core VMEM
    stays bounded for large B."""
    if B <= max_tile:
        return B
    for t in (256, 128, 64, 32, 16, 8):
        if B % t == 0:
            return t
    return B                               # full axis is always legal


def _pick_class_tile(TB, C, itemsize, block_budget_bytes):
    """Class (lane) tile: full axis if one (TB, C) block fits the budget, else
    a 128-aligned tile so a double-buffered block stays within the scoped
    VMEM we request."""
    if TB * C * itemsize <= block_budget_bytes:
        return C                           # whole class axis (always legal)
    tc = (block_budget_bytes // (TB * itemsize)) // 128 * 128
    tc = max(512, tc)                      # lanes >= 512 keeps HBM roofline high
    c_pad = ((C + 127) // 128) * 128
    return min(tc, c_pad)


def _combine(log_p, gamma):
    """Tiny O(N*B) sequential combine in plain JAX (matches the PyTorch loop).

    log_p: (N, B) = log p_i[b, label_b].
    """
    n = log_p.shape[0]
    per_head_ce = -jnp.mean(log_p, axis=1)                  # (N,)
    if gamma == 0:
        return jnp.sum(per_head_ce)
    p = jnp.exp(log_p)                                       # (N, B)
    loss = per_head_ce[0]
    for i in range(1, n):
        # ada_weight[b] = (1 - p_{i-1}[b, label_b])^gamma, normalized by its
        # batch mean.  NOTE: (1 - p) is clamped at 0 before **gamma as NaN
        # insurance when p marginally exceeds 1 from rounding; this diverges
        # from torch only in that corner (and, like torch, w/mean(w) is NaN
        # if every sample has p == 1 exactly).
        w = jnp.maximum(1.0 - p[i - 1], 0.0) ** gamma
        w = w / jnp.mean(w)
        loss = loss + (-jnp.mean(w * log_p[i]))
    return loss


@functools.partial(jax.jit, static_argnames=("gamma", "class_tile", "batch_tile"))
def adaloss(inputs, labels, gamma=0.0, class_tile=None, batch_tile=None):
    """inputs: (N, B, C) stacked head logits (any float dtype, bf16 ok);
    labels: (B,) int; returns scalar f32 loss."""
    N, B, C = inputs.shape
    itemsize = jnp.dtype(inputs.dtype).itemsize

    tb = batch_tile if batch_tile is not None else _pick_batch_tile(B)
    if tb != B and (B % tb != 0 or tb % 8 != 0):
        tb = B                             # fall back to the always-legal full axis

    block_budget, vmem_limit = _vmem_budgets()
    tc = class_tile if class_tile is not None else _pick_class_tile(
        tb, C, itemsize, block_budget)
    if tc != C:
        # Validate/round user-supplied tiles: last dim of a block must be a
        # multiple of 128 or equal to the full array dim.
        tc = max(128, (tc // 128) * 128)
        tc = min(tc, ((C + 127) // 128) * 128)
    kc = pl.cdiv(C, tc)
    nb = B // tb

    kernel = functools.partial(_head_lse_kernel, num_classes=C)

    lse = pl.pallas_call(
        kernel,
        grid=(N, nb, kc),
        in_specs=[
            # Logits stream in their NATIVE dtype; upcast happens in-register.
            # TODO(synk): on v5e, if the profile shows exposed DMA at head
            # boundaries, add pipeline_mode=pl.Buffered(3) here.
            pl.BlockSpec((1, tb, tc), lambda i, b, k: (i, b, k)),
        ],
        # Tiny per-(head, batch-tile) stats output; resident across the class
        # axis (index_map ignores k).
        out_specs=pl.BlockSpec((1, tb, 1), lambda i, b, k: (i, b, 0)),
        out_shape=jax.ShapeDtypeStruct((N, B, 1), jnp.float32),
        scratch_shapes=[pltpu.VMEM((tb, 1), jnp.float32)] * 2,   # m, s
        compiler_params=pltpu.CompilerParams(
            # heads & batch tiles independent -> parallel (megacore on v7x);
            # class reduction innermost -> arbitrary (scratch carried across it).
            dimension_semantics=("parallel", "parallel", "arbitrary"),
            vmem_limit_bytes=vmem_limit,
        ),
        cost_estimate=pl.CostEstimate(
            flops=4 * N * B * C,
            transcendentals=N * B * C,
            bytes_accessed=N * B * C * itemsize + N * B * 4,
        ),
    )(inputs)

    # Label-logit gather hoisted out of the kernel: O(N*B) XLA gather.
    lab = labels.astype(jnp.int32)
    idx = jnp.broadcast_to(lab[None, :, None], (N, B, 1))
    x_label = jnp.take_along_axis(inputs, idx, axis=-1).astype(jnp.float32)

    log_p = x_label[..., 0] - lse[..., 0]                      # (N, B)
    return _combine(log_p, gamma)


def adaloss_ref(inputs, labels, gamma):
    """Pure-JAX reference mirroring the PyTorch forward (softmax math in f32)."""
    x = inputs.astype(jnp.float32)
    N, B, C = x.shape
    log_pts = jax.nn.log_softmax(x, axis=-1)
    pts = jnp.exp(log_pts)
    onehot = jax.nn.one_hot(labels, C, dtype=jnp.float32)
    loss = -(onehot * log_pts[0]).mean(0).sum()
    for i in range(1, N):
        if gamma == 0:
            loss = loss + (-(onehot * log_pts[i]).mean(0).sum())
        else:
            predict = pts[i - 1][jnp.arange(B), labels][:, None]   # (B, 1)
            w = (1.0 - predict) ** gamma
            w = w / w.mean(axis=0, keepdims=True)
            loss = loss + (-(w * onehot * log_pts[i]).mean(0).sum())
    return loss


if __name__ == "__main__":
    key = jax.random.PRNGKey(0)
    k1, k2 = jax.random.split(key)

    # Small shapes consistent with the module: 3 heads, batch 8, 32 classes.
    N, B, C = 3, 8, 32
    inputs = jax.random.normal(k1, (N, B, C), dtype=jnp.float32)
    labels = jax.random.randint(k2, (B,), 0, C, dtype=jnp.int32)

    for gamma in (0.0, 2.0):    # plain CE path and adaptively-weighted path
        got = adaloss(inputs, labels, gamma=gamma)
        jax.block_until_ready(got)
        want = adaloss_ref(inputs, labels, gamma)
        assert jnp.allclose(got, want, rtol=1e-5, atol=1e-5), (gamma, got, want)

    # Exercise the class-tiled online-LSE path (multiple class tiles, no tail).
    N2, B2, C2 = 2, 16, 384
    inputs2 = jax.random.normal(k1, (N2, B2, C2), dtype=jnp.float32)
    labels2 = jax.random.randint(k2, (B2,), 0, C2, dtype=jnp.int32)
    got2 = adaloss(inputs2, labels2, gamma=2.0, class_tile=128)
    jax.block_until_ready(got2)
    want2 = adaloss_ref(inputs2, labels2, 2.0)
    assert jnp.allclose(got2, want2, rtol=1e-5, atol=1e-5), (got2, want2)

    # Native bf16 streaming + ragged class axis (last tile partially OOB,
    # masked only on the final class tile).
    N3, B3, C3 = 2, 8, 200
    inputs3 = jax.random.normal(k1, (N3, B3, C3), dtype=jnp.bfloat16)
    labels3 = jax.random.randint(k2, (B3,), 0, C3, dtype=jnp.int32)
    got3 = adaloss(inputs3, labels3, gamma=2.0, class_tile=128)
    jax.block_until_ready(got3)
    want3 = adaloss_ref(inputs3, labels3, 2.0)
    assert jnp.allclose(got3, want3, rtol=1e-4, atol=1e-4), (got3, want3)

    print("KERNEL_OK")
</pallas_src>

<mosaic_0001>
module attributes {stable_mosaic.version = 11 : i64} {
  func.func @_head_lse_kernel(%arg0: i32, %arg1: i32, %arg2: i32, %arg3: memref<1x8x32xf32, #tpu.memory_space<vmem>>, %arg4: memref<1x8x1xf32, #tpu.memory_space<vmem>>, %arg5: memref<8x1xf32, #tpu.memory_space<vmem>>, %arg6: memref<8x1xf32, #tpu.memory_space<vmem>>) attributes {dimension_semantics = [#tpu.dimension_semantics<parallel>, #tpu.dimension_semantics<parallel>, #tpu.dimension_semantics<arbitrary>], iteration_bounds = array<i64: 3, 1, 1>, scalar_prefetch = 0 : i64, scratch_operands = 2 : i64, tpu.core_type = #tpu.core_type<tc>, window_params = [{transform_indices = @transform_0, window_bounds = array<i64: 1, 8, 32>}, {transform_indices = @transform_1, window_bounds = array<i64: 1, 8, 1>}]} {
    %c0 = arith.constant 0 : index
    %c0_0 = arith.constant 0 : index
    %c0_1 = arith.constant 0 : index
    %0 = vector.load %arg3[%c0, %c0_0, %c0_1] : memref<1x8x32xf32, #tpu.memory_space<vmem>>, vector<1x8x32xf32>
    %1 = vector.shape_cast %0 : vector<1x8x32xf32> to vector<8x32xf32>
    %c0_i32 = arith.constant 0 : i32
    %2 = arith.cmpi eq, %arg2, %c0_i32 : i32
    %3 = arith.extui %2 : i1 to i32
    %c0_i32_2 = arith.constant 0 : i32
    %4 = arith.cmpi ne, %3, %c0_i32_2 : i32
    scf.if %4 {
      %cst_14 = arith.constant 0xFF800000 : f32
      %24 = vector.broadcast %cst_14 : f32 to vector<8x1xf32>
      %c0_15 = arith.constant 0 : index
      %c0_16 = arith.constant 0 : index
      %25 = vector.load %arg5[%c0_15, %c0_16] : memref<8x1xf32, #tpu.memory_space<vmem>>, vector<8x1xf32>
      tpu.vector_store %arg5[%c0_15, %c0_16], %24 {strides = array<i32>} : memref<8x1xf32, #tpu.memory_space<vmem>>, vector<8x1xf32>,
      %cst_17 = arith.constant 0.000000e+00 : f32
      %26 = vector.broadcast %cst_17 : f32 to vector<8x1xf32>
      %c0_18 = arith.constant 0 : index
      %c0_19 = arith.constant 0 : index
      %27 = vector.load %arg6[%c0_18, %c0_19] : memref<8x1xf32, #tpu.memory_space<vmem>>, vector<8x1xf32>
      tpu.vector_store %arg6[%c0_18, %c0_19], %26 {strides = array<i32>} : memref<8x1xf32, #tpu.memory_space<vmem>>, vector<8x1xf32>,
    } else {
    }
    %c0_3 = arith.constant 0 : index
    %c0_4 = arith.constant 0 : index
    %5 = vector.load %arg5[%c0_3, %c0_4] : memref<8x1xf32, #tpu.memory_space<vmem>>, vector<8x1xf32>
    %cst = arith.constant dense<0xFF800000> : vector<8xf32>
    %6 = vector.multi_reduction <maximumf>, %1, %cst [1] : vector<8x32xf32> to vector<8xf32>
    %7 = vector.shape_cast %6 : vector<8xf32> to vector<8x1xf32>
    %8 = arith.maximumf %5, %7 : vector<8x1xf32>
    %c0_5 = arith.constant 0 : index
    %c0_6 = arith.constant 0 : index
    %9 = vector.load %arg6[%c0_5, %c0_6] : memref<8x1xf32, #tpu.memory_space<vmem>>, vector<8x1xf32>
    %10 = arith.subf %5, %8 : vector<8x1xf32>
    %11 = math.exp %10 : vector<8x1xf32>
    %12 = arith.mulf %9, %11 : vector<8x1xf32>
    %13 = vector.broadcast %8 : vector<8x1xf32> to vector<8x32xf32>
    %14 = arith.subf %1, %13 : vector<8x32xf32>
    %15 = math.exp %14 : vector<8x32xf32>
    %cst_7 = arith.constant dense<0.000000e+00> : vector<8xf32>
    %16 = vector.multi_reduction <add>, %15, %cst_7 [1] : vector<8x32xf32> to vector<8xf32>
    %17 = vector.shape_cast %16 : vector<8xf32> to vector<8x1xf32>
    %18 = arith.addf %12, %17 : vector<8x1xf32>
    %c0_8 = arith.constant 0 : index
    %c0_9 = arith.constant 0 : index
    %19 = vector.load %arg6[%c0_8, %c0_9] : memref<8x1xf32, #tpu.memory_space<vmem>>, vector<8x1xf32>
    tpu.vector_store %arg6[%c0_8, %c0_9], %18 {strides = array<i32>} : memref<8x1xf32, #tpu.memory_space<vmem>>, vector<8x1xf32>,
    %c0_10 = arith.constant 0 : index
    %c0_11 = arith.constant 0 : index
    %20 = vector.load %arg5[%c0_10, %c0_11] : memref<8x1xf32, #tpu.memory_space<vmem>>, vector<8x1xf32>
    tpu.vector_store %arg5[%c0_10, %c0_11], %8 {strides = array<i32>} : memref<8x1xf32, #tpu.memory_space<vmem>>, vector<8x1xf32>,
    %c0_i32_12 = arith.constant 0 : i32
    %21 = arith.cmpi eq, %arg2, %c0_i32_12 : i32
    %22 = arith.extui %21 : i1 to i32
    %c0_i32_13 = arith.constant 0 : i32
    %23 = arith.cmpi ne, %22, %c0_i32_13 : i32
    scf.if %23 {
      %c0_14 = arith.constant 0 : index
      %c0_15 = arith.constant 0 : index
      %24 = vector.load %arg5[%c0_14, %c0_15] : memref<8x1xf32, #tpu.memory_space<vmem>>, vector<8x1xf32>
      %c0_16 = arith.constant 0 : index
      %c0_17 = arith.constant 0 : index
      %25 = vector.load %arg6[%c0_16, %c0_17] : memref<8x1xf32, #tpu.memory_space<vmem>>, vector<8x1xf32>
      %26 = math.log %25 : vector<8x1xf32>
      %27 = arith.addf %24, %26 : vector<8x1xf32>
      %c0_18 = arith.constant 0 : index
      %c0_19 = arith.constant 0 : index
      %c0_20 = arith.constant 0 : index
      %28 = vector.load %arg4[%c0_18, %c0_19, %c0_20] : memref<1x8x1xf32, #tpu.memory_space<vmem>>, vector<1x8x1xf32>
      %29 = vector.shape_cast %28 : vector<1x8x1xf32> to vector<8x1xf32>
      %30 = vector.shape_cast %27 : vector<8x1xf32> to vector<1x8x1xf32>
      tpu.vector_store %arg4[%c0_18, %c0_19, %c0_20], %30 {strides = array<i32>} : memref<1x8x1xf32, #tpu.memory_space<vmem>>, vector<1x8x1xf32>,
    } else {
    }
    return
  }
  func.func @transform_0(%arg0: i32, %arg1: i32, %arg2: i32) -> (i32, i32, i32) {
    %c0_i32 = arith.constant 0 : i32
    return %arg0, %arg1, %arg2 : i32, i32, i32
  }
  func.func @transform_1(%arg0: i32, %arg1: i32, %arg2: i32) -> (i32, i32, i32) {
    %c0_i32 = arith.constant 0 : i32
    %c0_i32_0 = arith.constant 0 : i32
    return %arg0, %arg1, %c0_i32 : i32, i32, i32
  }
}

</mosaic_0001>

<llo_original>
// kernel: adaloss.1
$region0: #{adaloss.1}
  #allocation0 [shape = 'u32[]', space=smem, size = 0x4, offset = 0x4, fixed_abs, tag = 'smem constant byte address 0x4 - core index']
  #allocation1 [shape = 'u32[144,128]{1,0:T(1,128)}', space=vmem, size = 0x12000, scoped, tag = 'internal scratch']
  #allocation2 [shape = 'f32[8,1]{1,0:T(8,128)}', space=vmem, size = 0x1000, scoped, tag = 'scratch operand']
  #allocation3 [shape = 'f32[8,1]{1,0:T(8,128)}', space=vmem, size = 0x1000, scoped, tag = 'scratch operand']
  %s0 = inlined_call_operand.hbm [shape: f32[3,8,32], index: 0, kind: input, shape index: {}]
  %s1 = inlined_call_operand.vmem [shape: f32[3,8,1], index: 1, kind: output, shape index: {}]
  %s2 = sld [smem:[#allocation0]]
  $region49: #{adaloss.1} parent=0
    _
  %s4 = ssub.s32 1, %s2
  %s5 = scalar_select 0, %s4, %s2
  $region1: #{adaloss.1} parent=0
    #allocation4 [shape = 'u8[8192]{0}', space=vmem, size = 0x2000, scoped, tag = 'input window, operand 0']
    #allocation5 [shape = 's32[2]{0}', space=sflag, size = 0x8, scoped, tag = 'scoped memory for adaloss.1']
    %6 = vsyncpa [#allocation5], 0
    %s7 = scalar_lea.sflag [#allocation5], 1
    %8 = vsyncpa %s7, 0
    loop: start=0, step=1, limit=5
    $region2: #{adaloss.1} parent=1 // loop_pre_header
      _
    $region3: #{adaloss.1} parent=1 // loop_header
      %s10 = sphi 0, %s14
      %p11 = scmp.ge.s32.totalorder %s10, 5
      %s17 = sphi 0, %s36
      %s18 = sphi 0, %s32
      %s19 = sphi 0, %s28
      %s20 = sphi 0, %s17
      %s21 = sphi 0, %s18
      %s22 = sphi 0, %s19
      %s23 = sphi 0, %s20
      %s24 = sphi 0, %s21
      %s25 = sphi 0, %s22
      %s43 = sphi 0, %s45
      %s46 = sphi 0, %s43
      %s47 = sphi 0, %s46
      %s63 = sphi 0, %s47
      %s71 = sphi 0, %s73
      %s74 = sphi 0, %s71
      %s75 = sphi 0, %s74
      %s91 = sphi 0, %s75
    $region4: #{adaloss.1} parent=1 // loop_header_branch
      %13 = sbr.rel (%p11) target = $region8
    $region5: #{adaloss.1} parent=1 // loop_body
      %s15 = ssub.s32 %s10, 1
      %s16 = ssub.s32 %s10, 2
      %s26 = sadd.s32 1, %s19
      %p27 = scmp.ge.s32.totalorder %s26, 1
      %s28 = scalar_select %p27, 0, %s26
      %s29 = sadd.s32 1, %s18
      %s30 = scalar_select %p27, %s29, %s18
      %p31 = scmp.ge.s32.totalorder %s30, 1
      %s32 = scalar_select %p31, 0, %s30
      %s33 = sadd.s32 1, %s17
      %s34 = scalar_select %p31, %s33, %s17
      %p35 = scmp.ge.s32.totalorder %s34, 3
      %s36 = scalar_select %p35, 0, %s34
      %s37 = ssub.s32 %s17, %s36
      %s38 = ssub.s32 %s18, %s32
      %s39 = sor.u32 %s37, %s38
      %s40 = ssub.s32 %s19, %s28
      %s41 = sor.u32 %s39, %s40
      %p42 = scmp.eq.s32.totalorder %s41, 0
      %s44 = sadd.s32 %s43, 1
      %s45 = scalar_select %p42, %s43, %s44
      %p48 = pneg %p42
      %p49 = scmp.eq.s32.totalorder %s10, 2
      %p50 = por %p48, %p49
      %p51 = scmp.ne.s32.totalorder %s43, %s46
      %p52 = scmp.eq.s32.totalorder %s10, 0
      %p53 = por %p51, %p52
      %p54 = scmp.ne.s32.totalorder %s43, %s46
      %p55 = scmp.eq.s32.totalorder %s15, 2
      %p56 = por %p54, %p55
      %p57 = scmp.ne.s32.totalorder %s46, %s47
      %p58 = scmp.eq.s32.totalorder %s15, 0
      %p59 = por %p57, %p58
      %p60 = scmp.ne.s32.totalorder %s46, %s47
      %p61 = scmp.eq.s32.totalorder %s16, 2
      %p62 = por %p60, %p61
      %p64 = scmp.ne.s32.totalorder %s47, %s63
      %p65 = scmp.eq.s32.totalorder %s16, 0
      %p66 = por %p64, %p65
      %s67 = ssub.s32 %s17, %s36
      %s68 = ssub.s32 %s18, %s32
      %s69 = sor.u32 %s67, %s68
      %p70 = scmp.eq.s32.totalorder %s69, 0
      %s72 = sadd.s32 %s71, 1
      %s73 = scalar_select %p70, %s71, %s72
      %p76 = pneg %p70
      %p77 = scmp.eq.s32.totalorder %s10, 2
      %p78 = por %p76, %p77
      %p79 = scmp.ne.s32.totalorder %s71, %s74
      %p80 = scmp.eq.s32.totalorder %s10, 0
      %p81 = por %p79, %p80
      %p82 = scmp.ne.s32.totalorder %s71, %s74
      %p83 = scmp.eq.s32.totalorder %s15, 2
      %p84 = por %p82, %p83
      %p85 = scmp.ne.s32.totalorder %s74, %s75
      %p86 = scmp.eq.s32.totalorder %s15, 0
      %p87 = por %p85, %p86
      %p88 = scmp.ne.s32.totalorder %s74, %s75
      %p89 = scmp.eq.s32.totalorder %s16, 2
      %p90 = por %p88, %p89
      %p92 = scmp.ne.s32.totalorder %s75, %s91
      %p93 = scmp.eq.s32.totalorder %s16, 0
      %p94 = por %p92, %p93
      %p95 = scmp.le.s32.totalorder 1, %s10
      %p96 = scmp.lt.s32.totalorder %s10, 4
      %p97 = pnand %p95, %p96
      %p98 = pneg %p97
      // Predicated region
      $region9: #{adaloss.1} parent=5 // pred_check
        _
      $region10: #{adaloss.1} parent=5 // pred_check_branch
        %100 = sbr.rel (%p97) target = $region12
      $region11: #{adaloss.1} parent=5 // pred_region
        %s101 = ssub.s32 %s10, 1
      $region12: #{adaloss.1} parent=5 // pred_fallthru
        _
      %p102 = scmp.lt.s32.totalorder %s10, 3
      // Predicated region
      $region13: #{adaloss.1} parent=5 // pred_check
        %p103 = pneg %p102
      $region14: #{adaloss.1} parent=5 // pred_check_branch
        %105 = sbr.rel (%p103) target = $region16
      $region15: #{adaloss.1} parent=5 // pred_region
        // Predicated region
        $region17: #{adaloss.1} parent=15 // pred_check
          %p106 = pneg %p53
        $region18: #{adaloss.1} parent=15 // pred_check_branch
          %108 = sbr.rel (%p106) target = $region20
        $region19: #{adaloss.1} parent=15 // pred_region
          %s109 = sand.u32 %s43, 1
          %s110 = scalar_lea.sflag [#allocation5], %s109
          %s111 = sand.u32 %s43, 1
          %s112 = smul.addr %s111, 8
          %s113 = scalar_lea.vmem [#allocation4], %s112
          %s115 = ssub.s32 128, 128
          %116 = vsyncadd %s110, %s115
          %s117 = sadd.s32 %s19, %s18
          %s118 = sadd.s32 %s117, %s17
          %s119 = smul.addr %s118, 128
          %s120 = scalar_lea.hbm %s0, %s119
          %s122 = sshll.u32 %s113, 4
          %s123 = int_to_ptr.vmem [resolvable:$true] %s122
          %125 = dma.hbm_to_vmem [thread:$0]  %s120, 128, %s123, %s110
        $region20: #{adaloss.1} parent=15 // pred_fallthru
          _
      $region16: #{adaloss.1} parent=5 // pred_fallthru
        _
      %p126 = scmp.le.s32.totalorder 1, %s10
      %p127 = scmp.lt.s32.totalorder %s10, 4
      %p128 = pnand %p126, %p127
      %p129 = pneg %p128
      // Predicated region
      $region21: #{adaloss.1} parent=5 // pred_check
        _
      $region22: #{adaloss.1} parent=5 // pred_check_branch
        %131 = sbr.rel (%p128) target = $region24
      $region23: #{adaloss.1} parent=5 // pred_region
        %s132 = ssub.s32 %s10, 1
        %s133 = sand.u32 %s46, 1
        %s134 = scalar_lea.sflag [#allocation5], %s133
        %s135 = sand.u32 %s46, 1
        %s136 = smul.addr %s135, 8
        %s137 = scalar_lea.vmem [#allocation4], %s136
        // Predicated region
        $region25: #{adaloss.1} parent=23 // pred_check
          %p138 = pneg %p59
        $region26: #{adaloss.1} parent=23 // pred_check_branch
          %140 = sbr.rel (%p138) target = $region28
        $region27: #{adaloss.1} parent=23 // pred_region
          %141 = dma.done %s134, 128
        $region28: #{adaloss.1} parent=23 // pred_fallthru
          _
        %s142 = sand.u32 %s46, 1
        %s143 = scalar_lea.sflag [#allocation5], %s142
        %s144 = sand.u32 %s46, 1
        %s145 = smul.addr %s144, 8
        %s146 = scalar_lea.vmem [#allocation4], %s145
        %p147 = pneg %p59
        %p148 = pneg %p56
        %p149 = pneg %p87
        %p150 = pneg %p84
        %p151 = scmp.lt.s32.totalorder %s20, 2
        %s152 = scalar_select %p151, %s20, 2
        %p153 = scmp.lt.s32.totalorder %s21, 0
        %s154 = scalar_select %p153, %s21, 0
        %s155 = sadd.s32 %s154, %s152
        %s156 = smul.addr %s155, 8
        %s157 = scalar_lea.vmem %s1, %s156
        %p158 = scmp.lt.s32.totalorder %s20, 2
        %s159 = scalar_select %p158, %s20, 2
        %p160 = scmp.lt.s32.totalorder %s21, 0
        %s161 = scalar_select %p160, %s21, 0
        %s162 = sadd.s32 %s161, %s159
        %s163 = smul.addr %s162, 8
        %s164 = scalar_lea.vmem %s1, %s163
        %v165 = vld [vmem:[%s137] sm:$0xff]
        %p166 = scmp.eq.s32.totalorder %s22, 0
        // Predicated region
        $region29: #{adaloss.1} parent=23 // pred_check
          %p167 = pneg %p166
        $region30: #{adaloss.1} parent=23 // pred_check_branch
          %169 = sbr.rel (%p167) target = $region32
        $region31: #{adaloss.1} parent=23 // pred_region
          %vm170 = vcmask 7168
          %171 = vst.msk [vmem:[#allocation2] sm:$0xff] %vm170, -inf
          %172 = vst.msk [vmem:[#allocation3] sm:$0xff] %vm170, 0.0
        $region32: #{adaloss.1} parent=23 // pred_fallthru
          _
        %v173 = vld [vmem:[#allocation2] sm:$0xff]
        %vm174 = vcmask 261120
        %v175 = vsel %vm174, %v165, -inf
        %176 = vmax.xlane.f32.xlu0 %v175
        %v177 = vpop.xlane.xlu0 %176
        %v178 = vmax.f32 %v173, %v177
        %v179 = vld [vmem:[#allocation3] sm:$0xff]
        %v180 = vsub.f32 %v173, %v178
        %v181 = vmul.f32 %v180, 1.442695
        %v182 = vpow.pop %v181
        %v183 = vmul.f32 %v179, %v182
        %185 = vset.pattern.permute.xlu0 0
        %186 = vperm.xlu0 %185, %v178
        %v187 = vpop.permute.xlu0 %186
        %v189 = vsub.f32 %v165, %v187
        %v190 = vmul.f32 %v189, 1.442695
        %v191 = vpow.pop %v190
        %v192 = vsel %vm174, %v191, 0.0
        %193 = vadd.xlane.f32.xlu0 %v192
        %v194 = vpop.xlane.xlu0 %193
        %v195 = vadd.f32 %v183, %v194
        %vm196 = vcmask 7168
        %197 = vst.msk [vmem:[#allocation3] sm:$0xff] %vm196, %v195
        %198 = vst.msk [vmem:[#allocation2] sm:$0xff] %vm196, %v178
        // Predicated region
        $region33: #{adaloss.1} parent=23 // pred_check
          %p199 = pneg %p166
        $region34: #{adaloss.1} parent=23 // pred_check_branch
          %201 = sbr.rel (%p199) target = $region36
        $region35: #{adaloss.1} parent=23 // pred_region
          %v202 = vld [vmem:[#allocation2] sm:$0xff]
          %v203 = vld [vmem:[#allocation3] sm:$0xff]
          %v204 = vlog2.pop %v203
          %v205 = vmul.f32 %v204, 0.6931472
          %v206 = vadd.f32 %v202, %v205
          %207 = vst.msk [vmem:[%s164] sm:$0xff] %vm196, %v206
        $region36: #{adaloss.1} parent=23 // pred_fallthru
          _
        %p208 = scmp.lt.s32.totalorder %s20, 2
        %s209 = scalar_select %p208, %s20, 2
        %p210 = scmp.lt.s32.totalorder %s21, 0
        %s211 = scalar_select %p210, %s21, 0
        %s212 = sadd.s32 %s211, %s209
        %s213 = smul.addr %s212, 8
        %s214 = scalar_lea.vmem %s1, %s213
        // Predicated region
        $region37: #{adaloss.1} parent=23 // pred_check
          %p215 = pneg %p84
        $region38: #{adaloss.1} parent=23 // pred_check_branch
          %217 = sbr.rel (%p215) target = $region40
        $region39: #{adaloss.1} parent=23 // pred_region
          _
        $region40: #{adaloss.1} parent=23 // pred_fallthru
          _
      $region24: #{adaloss.1} parent=5 // pred_fallthru
        _
      %p218 = scmp.le.s32.totalorder 2, %s10
      // Predicated region
      $region41: #{adaloss.1} parent=5 // pred_check
        %p219 = pneg %p218
      $region42: #{adaloss.1} parent=5 // pred_check_branch
        %221 = sbr.rel (%p219) target = $region44
      $region43: #{adaloss.1} parent=5 // pred_region
        %s222 = ssub.s32 %s10, 2
        // Predicated region
        $region45: #{adaloss.1} parent=43 // pred_check
          %p223 = pneg %p90
        $region46: #{adaloss.1} parent=43 // pred_check_branch
          %225 = sbr.rel (%p223) target = $region48
        $region47: #{adaloss.1} parent=43 // pred_region
          %p226 = scmp.lt.s32.totalorder %s23, 2
          %s227 = scalar_select %p226, %s23, 2
          %p228 = scmp.lt.s32.totalorder %s24, 0
          %s229 = scalar_select %p228, %s24, 0
          %s230 = sadd.s32 %s229, %s227
          %s231 = smul.addr %s230, 8
          %s232 = scalar_lea.vmem %s1, %s231
        $region48: #{adaloss.1} parent=43 // pred_fallthru
          _
      $region44: #{adaloss.1} parent=5 // pred_fallthru
        _
    $region6: #{adaloss.1} parent=1 // loop_footer
      %s14 = sadd.s32 1, %s10
    $region7: #{adaloss.1} parent=1 // loop_footer_branch
      %9 = sbr.rel target = $region3
    $region8: #{adaloss.1} parent=1 // loop_exit
      _
    %233 = vsyncpa [#allocation5], 1
    %s234 = scalar_lea.sflag [#allocation5], 1
    %235 = vsyncpa %s234, 1

</llo_original>
